<compile_context>
chip_gen: v6e
topology: v6e:2x2x1
jax: 0.10.0
libtpu: 0.0.40
codegen_flags: <defaults>
</compile_context>

<pallas_src>
import jax
import jax.numpy as jnp
from jax.experimental import pallas as pl
from jax.experimental.pallas import tpu as pltpu


def _identity_copy_kernel(x_ref, o_ref):
    # Pure pass-through of the current (tm, H) tile.
    o_ref[...] = x_ref[...]


def _round_up(x, m):
    return ((x + m - 1) // m) * m


def _choose_tile_rows(n_rows, row_bytes, sublane, *, max_rows=256,
                      vmem_budget_bytes=8 * 1024 * 1024):
    """Rows per tile, bounded by a VMEM budget (2x input + 2x output double buffers)."""
    tm = vmem_budget_bytes // max(1, 4 * row_bytes)
    tm = int(max(sublane, min(tm, max_rows)))
    tm = (tm // sublane) * sublane
    # Never bigger than the (padded) batch.
    tm = min(tm, _round_up(n_rows, sublane))
    # Keep >= 2 grid steps when the batch allows it (v7x has 2 TensorCores).
    if n_rows > sublane and n_rows <= tm:
        tm = max(sublane, _round_up((n_rows + 1) // 2, sublane))
    return tm


def input_bert_forward(inputs):
    """Pallas equivalent of InputBERT.forward: returns inputs['x_bert'] unchanged."""
    x = inputs["x_bert"]
    orig_shape = x.shape

    # Flatten to (rows, features); the feature axis is the lane (last) dimension.
    if x.ndim == 0:
        x2 = x.reshape(1, 1)
    elif x.ndim == 1:
        x2 = x.reshape(1, x.shape[0])
    else:
        x2 = x.reshape(-1, x.shape[-1])
    n_rows, n_feat = x2.shape

    itemsize = jnp.dtype(x2.dtype).itemsize
    sublane = max(8, 32 // itemsize)          # 8 for f32, 16 for bf16, 32 for int8
    tm = _choose_tile_rows(n_rows, n_feat * itemsize, sublane)

    # Pad the batch so arbitrary sizes work (review correctness concern).
    rows_padded = _round_up(n_rows, tm)
    if rows_padded != n_rows:
        x2 = jnp.pad(x2, ((0, rows_padded - n_rows), (0, 0)))

    out = pl.pallas_call(
        _identity_copy_kernel,
        out_shape=jax.ShapeDtypeStruct((rows_padded, n_feat), x2.dtype),
        grid_spec=pltpu.PrefetchScalarGridSpec(
            num_scalar_prefetch=0,
            grid=(rows_padded // tm,),
            in_specs=[pl.BlockSpec((tm, n_feat), lambda i: (i, 0))],
            out_specs=pl.BlockSpec((tm, n_feat), lambda i: (i, 0)),
        ),
        compiler_params=pltpu.CompilerParams(
            dimension_semantics=("parallel",),
            vmem_limit_bytes=32 * 1024 * 1024,   # headroom over the ~8 MiB tile budget
        ),
    )(x2)

    if rows_padded != n_rows:
        out = out[:n_rows]
    return out.reshape(orig_shape)


if __name__ == "__main__":
    key = jax.random.PRNGKey(0)
    k_bert, k_bow = jax.random.split(key, 2)

    # Small shapes consistent with the module: a batch of contextualized
    # (SBERT-style) document embeddings, plus an unused BoW entry in the dict.
    B, H = 16, 384
    x_bert = jax.random.normal(k_bert, (B, H), jnp.float32)
    x_bow = jax.random.uniform(k_bow, (B, 256), jnp.float32)  # ignored by InputBERT

    out = input_bert_forward({"x_bert": x_bert, "x_bow": x_bow})
    jax.block_until_ready(out)

    assert out.shape == x_bert.shape
    assert out.dtype == x_bert.dtype
    assert jnp.array_equal(out, x_bert)

    print("KERNEL_OK")
</pallas_src>

<mosaic_0001>
module attributes {stable_mosaic.version = 11 : i64} {
  func.func @_identity_copy_kernel(%arg0: i32, %arg1: memref<8x384xf32, #tpu.memory_space<vmem>>, %arg2: memref<8x384xf32, #tpu.memory_space<vmem>>) attributes {dimension_semantics = [#tpu.dimension_semantics<parallel>], iteration_bounds = array<i64: 2>, scalar_prefetch = 0 : i64, scratch_operands = 0 : i64, tpu.core_type = #tpu.core_type<tc>, window_params = [{transform_indices = @transform_0, window_bounds = array<i64: 8, 384>}, {transform_indices = @transform_1, window_bounds = array<i64: 8, 384>}]} {
    %c0 = arith.constant 0 : index
    %c0_0 = arith.constant 0 : index
    %0 = vector.load %arg1[%c0, %c0_0] : memref<8x384xf32, #tpu.memory_space<vmem>>, vector<8x384xf32>
    %c0_1 = arith.constant 0 : index
    %c0_2 = arith.constant 0 : index
    %1 = vector.load %arg2[%c0_1, %c0_2] : memref<8x384xf32, #tpu.memory_space<vmem>>, vector<8x384xf32>
    tpu.vector_store %arg2[%c0_1, %c0_2], %0 {strides = array<i32>} : memref<8x384xf32, #tpu.memory_space<vmem>>, vector<8x384xf32>,
    return
  }
  func.func @transform_0(%arg0: i32) -> (i32, i32) {
    %c0_i32 = arith.constant 0 : i32
    %c0_i32_0 = arith.constant 0 : i32
    return %arg0, %c0_i32 : i32, i32
  }
  func.func @transform_1(%arg0: i32) -> (i32, i32) {
    %c0_i32 = arith.constant 0 : i32
    %c0_i32_0 = arith.constant 0 : i32
    return %arg0, %c0_i32 : i32, i32
  }
}

</mosaic_0001>

<llo_original>
// kernel: tpu_custom_call.1
$region0: #{tpu_custom_call.1}
  #allocation0 [shape = 'u32[]', space=smem, size = 0x4, offset = 0x4, fixed_abs, tag = 'smem constant byte address 0x4 - core index']
  #allocation1 [shape = 'u32[144,128]{1,0:T(1,128)}', space=vmem, size = 0x12000, scoped, tag = 'internal scratch']
  %s0 = inlined_call_operand.hbm [shape: f32[16,384], index: 0, kind: input, shape index: {}]
  %s1 = inlined_call_operand.hbm [shape: f32[16,384], index: 1, kind: output, shape index: {}]
  %s2 = sld [smem:[#allocation0]]
  $region41: #{tpu_custom_call.1} parent=0
    _
  %s4 = ssub.s32 1, %s2
  %s5 = scalar_select 0, %s4, %s2
  $region1: #{tpu_custom_call.1} parent=0
    #allocation2 [shape = 'u8[24576]{0}', space=vmem, size = 0x6000, scoped, tag = 'input window, operand 0']
    #allocation3 [shape = 's32[2]{0}', space=sflag, size = 0x8, scoped, tag = 'scoped memory for tpu_custom_call.1']
    #allocation4 [shape = 's32[2]{0}', space=sflag, size = 0x8, scoped, tag = 'scoped memory for tpu_custom_call.1']
    #allocation5 [shape = 'u8[24576]{0}', space=vmem, size = 0x6000, scoped, tag = 'output window, operand 0']
    %6 = vsyncpa [#allocation3], 0
    %s7 = scalar_lea.sflag [#allocation3], 1
    %8 = vsyncpa %s7, 0
    %9 = vsyncpa [#allocation4], 0
    %s10 = scalar_lea.sflag [#allocation4], 1
    %11 = vsyncpa %s10, 0
    loop: start=0, step=1, limit=4
    $region2: #{tpu_custom_call.1} parent=1 // loop_pre_header
      _
    $region3: #{tpu_custom_call.1} parent=1 // loop_header
      %s13 = sphi 0, %s17
      %p14 = scmp.ge.s32.totalorder %s13, 4
      %s23 = sphi 0, %s25
      %s26 = sphi 0, %s23
      %s27 = sphi 0, %s26
      %s43 = sphi 0, %s27
      %s49 = sphi 0, %s51
      %s52 = sphi 0, %s49
      %s53 = sphi 0, %s52
      %s69 = sphi 0, %s53
    $region4: #{tpu_custom_call.1} parent=1 // loop_header_branch
      %16 = sbr.rel (%p14) target = $region8
    $region5: #{tpu_custom_call.1} parent=1 // loop_body
      %s18 = ssub.s32 %s13, 1
      %s19 = ssub.s32 %s13, 2
      %s20 = sadd.s32 %s13, 1
      %s21 = ssub.s32 %s13, %s20
      %p22 = scmp.eq.s32.totalorder %s21, 0
      %s24 = sadd.s32 %s23, 1
      %s25 = scalar_select %p22, %s23, %s24
      %p28 = pneg %p22
      %p29 = scmp.eq.s32.totalorder %s13, 1
      %p30 = por %p28, %p29
      %p31 = scmp.ne.s32.totalorder %s23, %s26
      %p32 = scmp.eq.s32.totalorder %s13, 0
      %p33 = por %p31, %p32
      %p34 = scmp.ne.s32.totalorder %s23, %s26
      %p35 = scmp.eq.s32.totalorder %s18, 1
      %p36 = por %p34, %p35
      %p37 = scmp.ne.s32.totalorder %s26, %s27
      %p38 = scmp.eq.s32.totalorder %s18, 0
      %p39 = por %p37, %p38
      %p40 = scmp.ne.s32.totalorder %s26, %s27
      %p41 = scmp.eq.s32.totalorder %s19, 1
      %p42 = por %p40, %p41
      %p44 = scmp.ne.s32.totalorder %s27, %s43
      %p45 = scmp.eq.s32.totalorder %s19, 0
      %p46 = por %p44, %p45
      %s47 = ssub.s32 %s13, %s20
      %p48 = scmp.eq.s32.totalorder %s47, 0
      %s50 = sadd.s32 %s49, 1
      %s51 = scalar_select %p48, %s49, %s50
      %p54 = pneg %p48
      %p55 = scmp.eq.s32.totalorder %s13, 1
      %p56 = por %p54, %p55
      %p57 = scmp.ne.s32.totalorder %s49, %s52
      %p58 = scmp.eq.s32.totalorder %s13, 0
      %p59 = por %p57, %p58
      %p60 = scmp.ne.s32.totalorder %s49, %s52
      %p61 = scmp.eq.s32.totalorder %s18, 1
      %p62 = por %p60, %p61
      %p63 = scmp.ne.s32.totalorder %s52, %s53
      %p64 = scmp.eq.s32.totalorder %s18, 0
      %p65 = por %p63, %p64
      %p66 = scmp.ne.s32.totalorder %s52, %s53
      %p67 = scmp.eq.s32.totalorder %s19, 1
      %p68 = por %p66, %p67
      %p70 = scmp.ne.s32.totalorder %s53, %s69
      %p71 = scmp.eq.s32.totalorder %s19, 0
      %p72 = por %p70, %p71
      %p73 = scmp.le.s32.totalorder 1, %s13
      %p74 = scmp.lt.s32.totalorder %s13, 3
      %p75 = pnand %p73, %p74
      %p76 = pneg %p75
      // Predicated region
      $region9: #{tpu_custom_call.1} parent=5 // pred_check
        _
      $region10: #{tpu_custom_call.1} parent=5 // pred_check_branch
        %78 = sbr.rel (%p75) target = $region12
      $region11: #{tpu_custom_call.1} parent=5 // pred_region
        %s79 = ssub.s32 %s13, 1
      $region12: #{tpu_custom_call.1} parent=5 // pred_fallthru
        _
      %p80 = scmp.lt.s32.totalorder %s13, 2
      // Predicated region
      $region13: #{tpu_custom_call.1} parent=5 // pred_check
        %p81 = pneg %p80
      $region14: #{tpu_custom_call.1} parent=5 // pred_check_branch
        %83 = sbr.rel (%p81) target = $region16
      $region15: #{tpu_custom_call.1} parent=5 // pred_region
        // Predicated region
        $region17: #{tpu_custom_call.1} parent=15 // pred_check
          %p84 = pneg %p33
        $region18: #{tpu_custom_call.1} parent=15 // pred_check_branch
          %86 = sbr.rel (%p84) target = $region20
        $region19: #{tpu_custom_call.1} parent=15 // pred_region
          %s87 = sand.u32 %s23, 1
          %s88 = scalar_lea.sflag [#allocation3], %s87
          %s89 = sand.u32 %s23, 1
          %s90 = smul.addr %s89, 24
          %s91 = scalar_lea.vmem [#allocation2], %s90
          %s93 = ssub.s32 384, 384
          %94 = vsyncadd %s88, %s93
          %s95 = smul.addr %s13, 3
          %s96 = smul.addr %s95, 128
          %s97 = scalar_lea.hbm %s0, %s96
          %s99 = sshll.u32 %s91, 4
          %s100 = int_to_ptr.vmem [resolvable:$true] %s99
          %102 = dma.hbm_to_vmem [thread:$0]  %s97, 384, %s100, %s88
        $region20: #{tpu_custom_call.1} parent=15 // pred_fallthru
          _
      $region16: #{tpu_custom_call.1} parent=5 // pred_fallthru
        _
      %p103 = scmp.le.s32.totalorder 1, %s13
      %p104 = scmp.lt.s32.totalorder %s13, 3
      %p105 = pnand %p103, %p104
      %p106 = pneg %p105
      // Predicated region
      $region21: #{tpu_custom_call.1} parent=5 // pred_check
        _
      $region22: #{tpu_custom_call.1} parent=5 // pred_check_branch
        %108 = sbr.rel (%p105) target = $region24
      $region23: #{tpu_custom_call.1} parent=5 // pred_region
        %s109 = ssub.s32 %s13, 1
        %s110 = sand.u32 %s26, 1
        %s111 = scalar_lea.sflag [#allocation3], %s110
        %s112 = sand.u32 %s26, 1
        %s113 = smul.addr %s112, 24
        %s114 = scalar_lea.vmem [#allocation2], %s113
        // Predicated region
        $region25: #{tpu_custom_call.1} parent=23 // pred_check
          %p115 = pneg %p39
        $region26: #{tpu_custom_call.1} parent=23 // pred_check_branch
          %117 = sbr.rel (%p115) target = $region28
        $region27: #{tpu_custom_call.1} parent=23 // pred_region
          %118 = dma.done %s111, 384
        $region28: #{tpu_custom_call.1} parent=23 // pred_fallthru
          _
        %s119 = sand.u32 %s26, 1
        %s120 = scalar_lea.sflag [#allocation3], %s119
        %s121 = sand.u32 %s26, 1
        %s122 = smul.addr %s121, 24
        %s123 = scalar_lea.vmem [#allocation2], %s122
        %p124 = pneg %p39
        %p125 = pneg %p36
        %p126 = pneg %p65
        %p127 = pneg %p62
        %s128 = sand.u32 %s52, 1
        %s129 = scalar_lea.sflag [#allocation4], %s128
        %s130 = sand.u32 %s52, 1
        %s131 = smul.addr %s130, 24
        %s132 = scalar_lea.vmem [#allocation5], %s131
        %v133 = vld [vmem:[%s114] sm:$0xff]
        %v134 = vld [vmem:[%s114 + $0x8] sm:$0xff]
        %v135 = vld [vmem:[%s114 + $0x10] sm:$0xff]
        %136 = vst [vmem:[%s132] sm:$0xff] %v133
        %137 = vst [vmem:[%s132 + $0x8] sm:$0xff] %v134
        %138 = vst [vmem:[%s132 + $0x10] sm:$0xff] %v135
        %s139 = sand.u32 %s52, 1
        %s140 = scalar_lea.sflag [#allocation4], %s139
        %s141 = sand.u32 %s52, 1
        %s142 = smul.addr %s141, 24
        %s143 = scalar_lea.vmem [#allocation5], %s142
        // Predicated region
        $region29: #{tpu_custom_call.1} parent=23 // pred_check
          %p144 = pneg %p62
        $region30: #{tpu_custom_call.1} parent=23 // pred_check_branch
          %146 = sbr.rel (%p144) target = $region32
        $region31: #{tpu_custom_call.1} parent=23 // pred_region
          %s148 = ssub.s32 384, 384
          %149 = vsyncadd %s140, %s148
          %s150 = smul.addr %s18, 3
          %s151 = smul.addr %s150, 128
          %s152 = scalar_lea.hbm %s1, %s151
          %s154 = sshll.u32 %s143, 4
          %s155 = int_to_ptr.vmem [resolvable:$true] %s154
          %157 = dma.vmem_to_hbm [thread:$0]  %s155, 384, %s152, %s140
        $region32: #{tpu_custom_call.1} parent=23 // pred_fallthru
          _
      $region24: #{tpu_custom_call.1} parent=5 // pred_fallthru
        _
      %p158 = scmp.le.s32.totalorder 2, %s13
      // Predicated region
      $region33: #{tpu_custom_call.1} parent=5 // pred_check
        %p159 = pneg %p158
      $region34: #{tpu_custom_call.1} parent=5 // pred_check_branch
        %161 = sbr.rel (%p159) target = $region36
      $region35: #{tpu_custom_call.1} parent=5 // pred_region
        %s162 = ssub.s32 %s13, 2
        // Predicated region
        $region37: #{tpu_custom_call.1} parent=35 // pred_check
          %p163 = pneg %p68
        $region38: #{tpu_custom_call.1} parent=35 // pred_check_branch
          %165 = sbr.rel (%p163) target = $region40
        $region39: #{tpu_custom_call.1} parent=35 // pred_region
          %s166 = sand.u32 %s53, 1
          %s167 = scalar_lea.sflag [#allocation4], %s166
          %s168 = sand.u32 %s53, 1
          %s169 = smul.addr %s168, 24
          %s170 = scalar_lea.vmem [#allocation5], %s169
          %171 = dma.done %s167, 384
        $region40: #{tpu_custom_call.1} parent=35 // pred_fallthru
          _
      $region36: #{tpu_custom_call.1} parent=5 // pred_fallthru
        _
    $region6: #{tpu_custom_call.1} parent=1 // loop_footer
      %s17 = sadd.s32 1, %s13
    $region7: #{tpu_custom_call.1} parent=1 // loop_footer_branch
      %12 = sbr.rel target = $region3
    $region8: #{tpu_custom_call.1} parent=1 // loop_exit
      _
    %172 = vsyncpa [#allocation3], 1
    %s173 = scalar_lea.sflag [#allocation3], 1
    %174 = vsyncpa %s173, 1
    %175 = vsyncpa [#allocation4], 1
    %s176 = scalar_lea.sflag [#allocation4], 1
    %177 = vsyncpa %s176, 1

</llo_original>
